<compile_context>
chip_gen: v6e
topology: v6e:2x2x1
jax: 0.10.0
libtpu: 0.0.40
codegen_flags: <defaults>
</compile_context>

<pallas_src>
import jax
import jax.numpy as jnp
from jax.experimental import pallas as pl
from jax.experimental.pallas import tpu as pltpu


# ----------------------------- Pallas kernel --------------------------------
def _lstm_forward_kernel(
    x_ref,      # (B, C)        f32 activations
    wg0_ref,    # (C, 3H)       bf16  fused (linear1 ∘ layer-0 gate) weights [i,g,o]
    bg0_ref,    # (1, 3H)       f32   fused bias: b1 @ w_ih0^T + b_ih0 + b_hh0
    wg1_ref,    # (H, 3H)       bf16  layer-1 gate weights [i,g,o]
    bg1_ref,    # (1, 3H)       f32   b_ih1 + b_hh1 ([i,g,o])
    w2t_ref,    # (H, OUT_PAD)  bf16  linear2 weight, transposed, zero-padded to 2048
    b2_ref,     # (1, OUT_PAD)  f32   linear2 bias, zero-padded
    out_ref,    # (B, OUT_PAD)  f32
):
    H = wg1_ref.shape[0]  # hidden size (layer_2_size)

    def lstm_cell(h_in, wg, bg):
        # seq_len == 1, zero initial state: recurrent term vanishes, forget gate unused.
        gates = jnp.dot(h_in.astype(jnp.bfloat16), wg[...],
                        preferred_element_type=jnp.float32) + bg[...]
        i_g = gates[:, 0 * H:1 * H]
        g_g = gates[:, 1 * H:2 * H]
        o_g = gates[:, 2 * H:3 * H]
        c = jax.nn.sigmoid(i_g) * jnp.tanh(g_g)
        return jax.nn.sigmoid(o_g) * jnp.tanh(c)

    # linear1 folded into the layer-0 gate matmul (exactly linear composition).
    h = lstm_cell(x_ref[...], wg0_ref, bg0_ref)
    # stacked LSTM layer 1
    h = lstm_cell(h, wg1_ref, bg1_ref)
    # linear2 -> 2048 (lane-dense; real width 2000, padding sliced off in wrapper)
    out_ref[...] = jnp.dot(h.astype(jnp.bfloat16), w2t_ref[...],
                           preferred_element_type=jnp.float32) + b2_ref[...]


# ------------------- one-time kernel-ready parameter prep --------------------
def prepare_kernel_params(params, out_pad=2048):
    """Do ALL weight massaging once, outside the per-call hot path."""
    H = params["w_ih1"].shape[0] // 4  # hidden size

    def igo_rows(a4h):
        # PyTorch LSTM gate order is [i, f, g, o]; drop the unused forget gate.
        return jnp.concatenate(
            [a4h[0 * H:1 * H], a4h[2 * H:3 * H], a4h[3 * H:4 * H]], axis=0)

    # ---- layer 0: fold linear1 into the gate pre-activation -----------------
    w_ih0_igo = igo_rows(params["w_ih0"])                     # (3H, L1)
    b0_igo = igo_rows(params["b_ih0"] + params["b_hh0"])      # (3H,)
    wg0 = params["w1"].T @ w_ih0_igo.T                        # (C, 3H)
    bg0 = params["b1"] @ w_ih0_igo.T + b0_igo                 # (3H,)

    # ---- layer 1 -------------------------------------------------------------
    wg1 = igo_rows(params["w_ih1"]).T                         # (H, 3H)
    bg1 = igo_rows(params["b_ih1"] + params["b_hh1"])         # (3H,)

    # ---- linear2, zero-padded to a lane-dense width --------------------------
    out_features = params["w2"].shape[0]                      # 2000
    w2t = jnp.zeros((H, out_pad), jnp.float32).at[:, :out_features].set(params["w2"].T)
    b2 = jnp.zeros((out_pad,), jnp.float32).at[:out_features].set(params["b2"])

    return {
        "wg0": wg0.astype(jnp.bfloat16),
        "bg0": bg0[None, :].astype(jnp.float32),
        "wg1": wg1.astype(jnp.bfloat16),
        "bg1": bg1[None, :].astype(jnp.float32),
        "w2t": w2t.astype(jnp.bfloat16),
        "b2": b2[None, :],
    }


# ------------------------------- wrapper -------------------------------------
def lstm_forward(x, kparams, out_features=2000):
    """x: (B, number_classes) float32. Returns (B, 1, out_features) float32."""
    B, C = x.shape
    H = kparams["wg1"].shape[0]
    OUT_PAD = kparams["w2t"].shape[1]

    args = (x, kparams["wg0"], kparams["bg0"], kparams["wg1"], kparams["bg1"],
            kparams["w2t"], kparams["b2"])

    flops = 2 * B * (C * 3 * H + H * 3 * H + H * OUT_PAD)
    transcendentals = 2 * 4 * B * H  # sigmoid(i), tanh(g), sigmoid(o), tanh(c) x 2 layers
    bytes_accessed = sum(int(a.size) * a.dtype.itemsize for a in args) + B * OUT_PAD * 4

    vmem = pl.BlockSpec(memory_space=pltpu.MemorySpace.VMEM)
    out = pl.pallas_call(
        _lstm_forward_kernel,
        out_shape=jax.ShapeDtypeStruct((B, OUT_PAD), jnp.float32),
        in_specs=[vmem] * len(args),
        out_specs=vmem,
        cost_estimate=pl.CostEstimate(
            flops=flops, transcendentals=transcendentals,
            bytes_accessed=bytes_accessed),
    )(*args)

    # slice off the lane padding and restore the seq dim (PyTorch x.unsqueeze(1))
    return out[:, :out_features][:, None, :]
    # TODO(synk): if batch scales up, pad B to a multiple of 8 and add a
    # ("parallel",) batch grid so v7x's second TensorCore takes half the rows.


# --------------------------- parameter construction --------------------------
def init_params(key, number_classes, l1, l2, out=2000):
    def uniform(key, shape, fan_in):
        bound = 1.0 / jnp.sqrt(jnp.float32(fan_in))
        return jax.random.uniform(key, shape, jnp.float32, -bound, bound)

    ks = jax.random.split(key, 12)
    return {
        # linear1: number_classes -> l1
        "w1": uniform(ks[0], (l1, number_classes), number_classes),
        "b1": uniform(ks[1], (l1,), number_classes),
        # LSTM layer 0: input l1, hidden l2 (W_hh omitted: h0 == 0, seq_len == 1)
        "w_ih0": uniform(ks[2], (4 * l2, l1), l2),
        "b_ih0": uniform(ks[3], (4 * l2,), l2),
        "b_hh0": uniform(ks[4], (4 * l2,), l2),
        # LSTM layer 1: input l2, hidden l2
        "w_ih1": uniform(ks[5], (4 * l2, l2), l2),
        "b_ih1": uniform(ks[6], (4 * l2,), l2),
        "b_hh1": uniform(ks[7], (4 * l2,), l2),
        # linear2: l2 -> 2000
        "w2": uniform(ks[8], (out, l2), l2),
        "b2": uniform(ks[9], (out,), l2),
    }


# ----------------------------- reference (JAX, f32) ---------------------------
def lstm_forward_ref(x, params):
    h = x @ params["w1"].T + params["b1"]

    def cell(h_in, w_ih, b_ih, b_hh):
        gates = h_in @ w_ih.T + b_ih + b_hh
        H = w_ih.shape[0] // 4
        i, f, g, o = (gates[:, k * H:(k + 1) * H] for k in range(4))
        c = jax.nn.sigmoid(i) * jnp.tanh(g)  # c0 == 0 -> forget gate irrelevant
        return jax.nn.sigmoid(o) * jnp.tanh(c)

    h = cell(h, params["w_ih0"], params["b_ih0"], params["b_hh0"])
    h = cell(h, params["w_ih1"], params["b_ih1"], params["b_hh1"])
    out = h @ params["w2"].T + params["b2"]
    return out[:, None, :]


if __name__ == "__main__":
    B, NUM_CLASSES, L1, L2 = 2, 8, 32, 64

    key = jax.random.PRNGKey(0)
    kx, ky, kp = jax.random.split(key, 3)
    x = jax.random.normal(kx, (B, NUM_CLASSES), jnp.float32)
    y = jax.random.randint(ky, (B,), 0, NUM_CLASSES)  # `y` is unused by forward()
    params = init_params(kp, NUM_CLASSES, L1, L2)

    # one-time kernel-ready parameter preparation (outside the hot path)
    kparams = prepare_kernel_params(params)

    out = jax.block_until_ready(lstm_forward(x, kparams))
    ref = lstm_forward_ref(x, params)

    assert out.shape == (B, 1, 2000), out.shape
    # bf16 weights / bf16 MXU inputs with f32 accumulation -> relaxed tolerance
    max_err = float(jnp.max(jnp.abs(out - ref)))
    assert max_err < 3e-2, f"mismatch vs reference: max abs err {max_err}"
    print("KERNEL_OK")
</pallas_src>

<mosaic_0001>
module attributes {stable_mosaic.version = 11 : i64} {
  func.func @_lstm_forward_kernel(%arg0: memref<2x8xf32, #tpu.memory_space<vmem>>, %arg1: memref<8x192xbf16, #tpu.memory_space<vmem>>, %arg2: memref<1x192xf32, #tpu.memory_space<vmem>>, %arg3: memref<64x192xbf16, #tpu.memory_space<vmem>>, %arg4: memref<1x192xf32, #tpu.memory_space<vmem>>, %arg5: memref<64x2048xbf16, #tpu.memory_space<vmem>>, %arg6: memref<1x2048xf32, #tpu.memory_space<vmem>>, %arg7: memref<2x2048xf32, #tpu.memory_space<vmem>>) attributes {dimension_semantics = [], scalar_prefetch = 0 : i64, scratch_operands = 0 : i64, tpu.core_type = #tpu.core_type<tc>} {
    %c0 = arith.constant 0 : index
    %c0_0 = arith.constant 0 : index
    %0 = vector.load %arg0[%c0, %c0_0] : memref<2x8xf32, #tpu.memory_space<vmem>>, vector<2x8xf32>
    %1 = arith.truncf %0 : vector<2x8xf32> to vector<2x8xbf16>
    %c0_1 = arith.constant 0 : index
    %c0_2 = arith.constant 0 : index
    %2 = vector.load %arg1[%c0_1, %c0_2] : memref<8x192xbf16, #tpu.memory_space<vmem>>, vector<8x192xbf16>
    %cst = arith.constant dense<0.000000e+00> : vector<2x192xf32>
    %3 = tpu.matmul %1, %2, %cst {dimension_numbers = #tpu.dot_dimension_numbers<[1], [0], [0], [1], [0, 0, 1, 1], [], []>} : vector<2x8xbf16>, vector<8x192xbf16>, vector<2x192xf32> -> vector<2x192xf32>
    %c0_3 = arith.constant 0 : index
    %c0_4 = arith.constant 0 : index
    %4 = vector.load %arg2[%c0_3, %c0_4] : memref<1x192xf32, #tpu.memory_space<vmem>>, vector<1x192xf32>
    %5 = vector.broadcast %4 : vector<1x192xf32> to vector<2x192xf32>
    %6 = arith.addf %3, %5 : vector<2x192xf32>
    %7 = vector.extract_strided_slice %6 {offsets = [0, 0], sizes = [2, 64], strides = [1, 1]} : vector<2x192xf32> to vector<2x64xf32>
    %8 = vector.extract_strided_slice %6 {offsets = [0, 64], sizes = [2, 64], strides = [1, 1]} : vector<2x192xf32> to vector<2x64xf32>
    %9 = vector.extract_strided_slice %6 {offsets = [0, 128], sizes = [2, 64], strides = [1, 1]} : vector<2x192xf32> to vector<2x64xf32>
    %10 = arith.negf %7 : vector<2x64xf32>
    %11 = math.exp %10 : vector<2x64xf32>
    %cst_5 = arith.constant 1.000000e+00 : f32
    %12 = vector.broadcast %cst_5 : f32 to vector<2x64xf32>
    %13 = arith.addf %12, %11 : vector<2x64xf32>
    %14 = arith.divf %12, %13 : vector<2x64xf32>
    %15 = math.tanh %8 : vector<2x64xf32>
    %16 = arith.mulf %14, %15 : vector<2x64xf32>
    %17 = arith.negf %9 : vector<2x64xf32>
    %18 = math.exp %17 : vector<2x64xf32>
    %cst_6 = arith.constant 1.000000e+00 : f32
    %19 = vector.broadcast %cst_6 : f32 to vector<2x64xf32>
    %20 = arith.addf %19, %18 : vector<2x64xf32>
    %21 = arith.divf %19, %20 : vector<2x64xf32>
    %22 = math.tanh %16 : vector<2x64xf32>
    %23 = arith.mulf %21, %22 : vector<2x64xf32>
    %24 = arith.truncf %23 : vector<2x64xf32> to vector<2x64xbf16>
    %c0_7 = arith.constant 0 : index
    %c0_8 = arith.constant 0 : index
    %25 = vector.load %arg3[%c0_7, %c0_8] : memref<64x192xbf16, #tpu.memory_space<vmem>>, vector<64x192xbf16>
    %cst_9 = arith.constant dense<0.000000e+00> : vector<2x192xf32>
    %26 = tpu.matmul %24, %25, %cst_9 {dimension_numbers = #tpu.dot_dimension_numbers<[1], [0], [0], [1], [0, 0, 1, 1], [], []>} : vector<2x64xbf16>, vector<64x192xbf16>, vector<2x192xf32> -> vector<2x192xf32>
    %c0_10 = arith.constant 0 : index
    %c0_11 = arith.constant 0 : index
    %27 = vector.load %arg4[%c0_10, %c0_11] : memref<1x192xf32, #tpu.memory_space<vmem>>, vector<1x192xf32>
    %28 = vector.broadcast %27 : vector<1x192xf32> to vector<2x192xf32>
    %29 = arith.addf %26, %28 : vector<2x192xf32>
    %30 = vector.extract_strided_slice %29 {offsets = [0, 0], sizes = [2, 64], strides = [1, 1]} : vector<2x192xf32> to vector<2x64xf32>
    %31 = vector.extract_strided_slice %29 {offsets = [0, 64], sizes = [2, 64], strides = [1, 1]} : vector<2x192xf32> to vector<2x64xf32>
    %32 = vector.extract_strided_slice %29 {offsets = [0, 128], sizes = [2, 64], strides = [1, 1]} : vector<2x192xf32> to vector<2x64xf32>
    %33 = arith.negf %30 : vector<2x64xf32>
    %34 = math.exp %33 : vector<2x64xf32>
    %cst_12 = arith.constant 1.000000e+00 : f32
    %35 = vector.broadcast %cst_12 : f32 to vector<2x64xf32>
    %36 = arith.addf %35, %34 : vector<2x64xf32>
    %37 = arith.divf %35, %36 : vector<2x64xf32>
    %38 = math.tanh %31 : vector<2x64xf32>
    %39 = arith.mulf %37, %38 : vector<2x64xf32>
    %40 = arith.negf %32 : vector<2x64xf32>
    %41 = math.exp %40 : vector<2x64xf32>
    %cst_13 = arith.constant 1.000000e+00 : f32
    %42 = vector.broadcast %cst_13 : f32 to vector<2x64xf32>
    %43 = arith.addf %42, %41 : vector<2x64xf32>
    %44 = arith.divf %42, %43 : vector<2x64xf32>
    %45 = math.tanh %39 : vector<2x64xf32>
    %46 = arith.mulf %44, %45 : vector<2x64xf32>
    %47 = arith.truncf %46 : vector<2x64xf32> to vector<2x64xbf16>
    %c0_14 = arith.constant 0 : index
    %c0_15 = arith.constant 0 : index
    %48 = vector.load %arg5[%c0_14, %c0_15] : memref<64x2048xbf16, #tpu.memory_space<vmem>>, vector<64x2048xbf16>
    %cst_16 = arith.constant dense<0.000000e+00> : vector<2x2048xf32>
    %49 = tpu.matmul %47, %48, %cst_16 {dimension_numbers = #tpu.dot_dimension_numbers<[1], [0], [0], [1], [0, 0, 1, 1], [], []>} : vector<2x64xbf16>, vector<64x2048xbf16>, vector<2x2048xf32> -> vector<2x2048xf32>
    %c0_17 = arith.constant 0 : index
    %c0_18 = arith.constant 0 : index
    %50 = vector.load %arg6[%c0_17, %c0_18] : memref<1x2048xf32, #tpu.memory_space<vmem>>, vector<1x2048xf32>
    %51 = vector.broadcast %50 : vector<1x2048xf32> to vector<2x2048xf32>
    %52 = arith.addf %49, %51 : vector<2x2048xf32>
    %c0_19 = arith.constant 0 : index
    %c0_20 = arith.constant 0 : index
    %53 = vector.load %arg7[%c0_19, %c0_20] : memref<2x2048xf32, #tpu.memory_space<vmem>>, vector<2x2048xf32>
    tpu.vector_store %arg7[%c0_19, %c0_20], %52 {strides = array<i32>} : memref<2x2048xf32, #tpu.memory_space<vmem>>, vector<2x2048xf32>,
    return
  }
}

</mosaic_0001>

<llo_original>
// kernel: tpu_custom_call.1
$region0: #{tpu_custom_call.1}
  #allocation0 [shape = 'u32[]', space=smem, size = 0x4, offset = 0x4, fixed_abs, tag = 'smem constant byte address 0x4 - core index']
  #allocation1 [shape = 'u32[144,128]{1,0:T(1,128)}', space=vmem, size = 0x12000, scoped, tag = 'internal scratch']
  %s0 = inlined_call_operand.hbm [shape: f32[2,8], index: 0, kind: input, shape index: {}]
  %s1 = inlined_call_operand.hbm [shape: bf16[8,192], index: 1, kind: input, shape index: {}]
  %s2 = inlined_call_operand.vmem [shape: f32[1,192], index: 2, kind: input, shape index: {}]
  %s3 = inlined_call_operand.hbm [shape: bf16[64,192], index: 3, kind: input, shape index: {}]
  %s4 = inlined_call_operand.vmem [shape: f32[1,192], index: 4, kind: input, shape index: {}]
  %s5 = inlined_call_operand.hbm [shape: bf16[64,2048], index: 5, kind: input, shape index: {}]
  %s6 = inlined_call_operand.hbm [shape: f32[1,2048], index: 6, kind: input, shape index: {}]
  %s7 = inlined_call_operand.hbm [shape: f32[2,2048], index: 7, kind: output, shape index: {}]
  %s8 = sld [smem:[#allocation0]]
  $region58: #{tpu_custom_call.1} parent=0
    _
  %s10 = ssub.s32 1, %s8
  %s11 = scalar_select 0, %s10, %s8
  $region1: #{tpu_custom_call.1} parent=0
    #allocation2 [shape = 'u8[1024]{0}', space=vmem, size = 0x400, scoped, tag = 'input window, operand 0, single buffered']
    #allocation3 [shape = 's32[1]{0}', space=sflag, size = 0x4, scoped, tag = 'scoped memory for tpu_custom_call.1']
    #allocation4 [shape = 's32[1]{0}', space=sflag, size = 0x4, scoped, tag = 'scoped memory for tpu_custom_call.1']
    #allocation5 [shape = 'u8[4096]{0}', space=vmem, size = 0x1000, scoped, tag = 'input window, operand 1, single buffered']
    #allocation6 [shape = 's32[1]{0}', space=sflag, size = 0x4, scoped, tag = 'scoped memory for tpu_custom_call.1']
    #allocation7 [shape = 'u8[32768]{0}', space=vmem, size = 0x8000, scoped, tag = 'input window, operand 3, single buffered']
    #allocation8 [shape = 'u8[262144]{0}', space=vmem, size = 0x40000, scoped, tag = 'input window, operand 5, single buffered']
    #allocation9 [shape = 's32[1]{0}', space=sflag, size = 0x4, scoped, tag = 'scoped memory for tpu_custom_call.1']
    #allocation10 [shape = 'u8[8192]{0}', space=vmem, size = 0x2000, scoped, tag = 'input window, operand 6, single buffered']
    #allocation11 [shape = 'u8[16384]{0}', space=vmem, size = 0x4000, scoped, tag = 'output window, operand 0, single buffered']
    %12 = vsyncpa [#allocation3], 0
    %13 = vsyncpa [#allocation6], 0
    %14 = vsyncpa [#allocation9], 0
    %15 = vsyncpa [#allocation4], 0
    // Predicated region
    $region2: #{tpu_custom_call.1} parent=1 // pred_check
      _
    $region3: #{tpu_custom_call.1} parent=1 // pred_check_branch
      %17 = sbr.rel (0) target = $region5
    $region4: #{tpu_custom_call.1} parent=1 // pred_region
      %s19 = ssub.s32 32, 32
      %20 = vsyncadd [#allocation3], %s19
      %s22 = sshll.u32 [#allocation2], 4
      %s23 = int_to_ptr.vmem [resolvable:$true] %s22
      %25 = dma.hbm_to_vmem [thread:$0]  %s0, 32, %s23, [#allocation3]
    $region5: #{tpu_custom_call.1} parent=1 // pred_fallthru
      _
    // Predicated region
    $region6: #{tpu_custom_call.1} parent=1 // pred_check
      _
    $region7: #{tpu_custom_call.1} parent=1 // pred_check_branch
      %27 = sbr.rel (0) target = $region9
    $region8: #{tpu_custom_call.1} parent=1 // pred_region
      %s29 = ssub.s32 128, 128
      %30 = vsyncadd [#allocation6], %s29
      %s32 = sshll.u32 [#allocation5], 4
      %s33 = int_to_ptr.vmem [resolvable:$true] %s32
      %35 = dma.hbm_to_vmem [thread:$0]  %s1, 128, %s33, [#allocation6]
    $region9: #{tpu_custom_call.1} parent=1 // pred_fallthru
      _
    // Predicated region
    $region10: #{tpu_custom_call.1} parent=1 // pred_check
      _
    $region11: #{tpu_custom_call.1} parent=1 // pred_check_branch
      %37 = sbr.rel (0) target = $region13
    $region12: #{tpu_custom_call.1} parent=1 // pred_region
      _
    $region13: #{tpu_custom_call.1} parent=1 // pred_fallthru
      _
    // Predicated region
    $region14: #{tpu_custom_call.1} parent=1 // pred_check
      _
    $region15: #{tpu_custom_call.1} parent=1 // pred_check_branch
      %39 = sbr.rel (0) target = $region17
    $region16: #{tpu_custom_call.1} parent=1 // pred_region
      %s41 = ssub.s32 1024, 1024
      %42 = vsyncadd [#allocation6], %s41
      %s43 = sshll.u32 [#allocation7], 4
      %s44 = int_to_ptr.vmem [resolvable:$true] %s43
      %49 = dma.hbm_to_vmem [thread:$0]  %s3, 1024, %s44, [#allocation6], 128, 128, 8
    $region17: #{tpu_custom_call.1} parent=1 // pred_fallthru
      _
    // Predicated region
    $region18: #{tpu_custom_call.1} parent=1 // pred_check
      _
    $region19: #{tpu_custom_call.1} parent=1 // pred_check_branch
      %51 = sbr.rel (0) target = $region21
    $region20: #{tpu_custom_call.1} parent=1 // pred_region
      _
    $region21: #{tpu_custom_call.1} parent=1 // pred_fallthru
      _
    // Predicated region
    $region22: #{tpu_custom_call.1} parent=1 // pred_check
      _
    $region23: #{tpu_custom_call.1} parent=1 // pred_check_branch
      %53 = sbr.rel (0) target = $region25
    $region24: #{tpu_custom_call.1} parent=1 // pred_region
      %s55 = ssub.s32 8192, 8192
      %56 = vsyncadd [#allocation9], %s55
      %s57 = sshll.u32 [#allocation8], 4
      %s58 = int_to_ptr.vmem [resolvable:$true] %s57
      %63 = dma.hbm_to_vmem [thread:$0]  %s5, 8192, %s58, [#allocation9], 1024, 1024, 64
    $region25: #{tpu_custom_call.1} parent=1 // pred_fallthru
      _
    // Predicated region
    $region26: #{tpu_custom_call.1} parent=1 // pred_check
      _
    $region27: #{tpu_custom_call.1} parent=1 // pred_check_branch
      %65 = sbr.rel (0) target = $region29
    $region28: #{tpu_custom_call.1} parent=1 // pred_region
      %s67 = ssub.s32 256, 256
      %68 = vsyncadd [#allocation9], %s67
      %s70 = sshll.u32 [#allocation10], 4
      %s71 = int_to_ptr.vmem [resolvable:$true] %s70
      %73 = dma.hbm_to_vmem [thread:$0]  %s6, 256, %s71, [#allocation9]
    $region29: #{tpu_custom_call.1} parent=1 // pred_fallthru
      _
    // Predicated region
    $region30: #{tpu_custom_call.1} parent=1 // pred_check
      _
    $region31: #{tpu_custom_call.1} parent=1 // pred_check_branch
      %75 = sbr.rel (0) target = $region33
    $region32: #{tpu_custom_call.1} parent=1 // pred_region
      %76 = dma.done [#allocation3], 32
    $region33: #{tpu_custom_call.1} parent=1 // pred_fallthru
      _
    // Predicated region
    $region34: #{tpu_custom_call.1} parent=1 // pred_check
      _
    $region35: #{tpu_custom_call.1} parent=1 // pred_check_branch
      %78 = sbr.rel (0) target = $region37
    $region36: #{tpu_custom_call.1} parent=1 // pred_region
      %79 = dma.done [#allocation6], 128
    $region37: #{tpu_custom_call.1} parent=1 // pred_fallthru
      _
    // Predicated region
    $region38: #{tpu_custom_call.1} parent=1 // pred_check
      _
    $region39: #{tpu_custom_call.1} parent=1 // pred_check_branch
      %81 = sbr.rel (0) target = $region41
    $region40: #{tpu_custom_call.1} parent=1 // pred_region
      %82 = dma.done [#allocation6], 1024
    $region41: #{tpu_custom_call.1} parent=1 // pred_fallthru
      _
    // Predicated region
    $region42: #{tpu_custom_call.1} parent=1 // pred_check
      _
    $region43: #{tpu_custom_call.1} parent=1 // pred_check_branch
      %84 = sbr.rel (0) target = $region45
    $region44: #{tpu_custom_call.1} parent=1 // pred_region
      %85 = dma.done [#allocation9], 8192
    $region45: #{tpu_custom_call.1} parent=1 // pred_fallthru
      _
    // Predicated region
    $region46: #{tpu_custom_call.1} parent=1 // pred_check
      _
    $region47: #{tpu_custom_call.1} parent=1 // pred_check_branch
      %87 = sbr.rel (0) target = $region49
    $region48: #{tpu_custom_call.1} parent=1 // pred_region
      %88 = dma.done [#allocation9], 256
    $region49: #{tpu_custom_call.1} parent=1 // pred_fallthru
      _
    %v90 = vld [vmem:[#allocation2] sm:$0x3]
    %v91 = vpack.c.bf16 %v90, %v90
    %v92 = vld [vmem:[#allocation5] sm:$0xff]
    %v93 = vld [vmem:[%s2] sm:$0x3]
    %v95 = vlaneseq
    %v96 = vshrl.u32 %v95, 7
    %v97 = vsub.s32 0, %v96
    %v98 = vrot.slane %v93, %v97
    %v99 = vlaneseq
    %v100 = vshrl.u32 %v99, 7
    %v101 = vsub.s32 1, %v100
    %v102 = vrot.slane %v93, %v101
    %v106 = vunpack.c.l.b16 %v92
    %v107 = vunpack.c.h.b16 %v92
    %v108 = vpack.c.b16 %v106, %v106
    %v109 = vpack.c.b16 %v107, %v107
    %vm110 = vcmask 64512
    %v112 = vsel %vm110, %v91, 0
    %vm114 = vcmask 1043456
    %v116 = vsel %vm114, %v108, 0
    %v119 = vsel %vm114, %v109, 0
    %121 = vmatprep.subr.bf16.mxu0 0
    %122 = vmatpush1.bf16.msra.mxu0 0
    %123 = vmatprep.subr.bf16.mxu0 0
    %124 = vmatpush1.bf16.msra.mxu0 0
    %125 = vmatprep.subr.bf16.mxu0 0
    %126 = vmatpush1.bf16.msra.mxu0 0
    %127 = vmatprep.subr.bf16.mxu0 0
    %128 = vmatpush1.bf16.msra.mxu0 0
    %129 = vmatprep.subr.bf16.mxu0 0
    %130 = vmatpush1.bf16.msra.mxu0 0
    %131 = vmatprep.subr.bf16.mxu0 0
    %132 = vmatpush1.bf16.msra.mxu0 0
    %133 = vmatprep.subr.bf16.mxu0 0
    %134 = vmatpush1.bf16.msra.mxu0 0
    %135 = vmatprep.subr.bf16.mxu0 %v119
    %136 = vmatpush1.bf16.msra.mxu0 %v116
    %137 = vmatprep.subr.bf16.mxu0 0
    %138 = vmatpush2.bf16.msra.mxu0 0
    %139 = vmatprep.subr.bf16.mxu0 0
    %140 = vmatpush2.bf16.msra.mxu0 0
    %141 = vmatprep.subr.bf16.mxu0 0
    %142 = vmatpush2.bf16.msra.mxu0 0
    %143 = vmatprep.subr.bf16.mxu0 0
    %144 = vmatpush2.bf16.msra.mxu0 0
    %145 = vmatprep.subr.bf16.mxu0 0
    %146 = vmatpush2.bf16.msra.mxu0 0
    %147 = vmatprep.subr.bf16.mxu0 0
    %148 = vmatpush2.bf16.msra.mxu0 0
    %149 = vmatprep.subr.bf16.mxu0 0
    %150 = vmatpush2.bf16.msra.mxu0 0
    %151 = vmatprep.subr.bf16.mxu0 0
    %152 = vmatpush2.bf16.msra.mxu0 0
    %153 = vmatprep.mubr.bf16.mxu0 0
    %154 = vmatmul.mubr.bf16.gmra.mxu0 %v112
    %v155 = vpop.f32.mrf.mxu0
    %v156 = vadd.f32 %v98, %v155
    %v157 = vpop.f32.mrf.mxu0
    %v158 = vadd.f32 %v102, %v157
    %v159 = vpop.f32.mrf.mxu0
    %v160 = vpop.f32.mrf.mxu0
    %161 = vdwg.mxu0
    %v162 = vxor.u32 %v156, 2147483648
    %v163 = vmul.f32 %v162, 1.442695
    %v164 = vpow.pop %v163
    %v165 = vadd.f32 %v164, 1.0
    %v166 = vrcp.pop %v165
    %v167 = vmul.f32 1.0, %v166
    %v168 = vtanh.pop %v156
    %170 = vrot.lane.b32.xlu0 %v168, 64
    %v171 = vpop.permute.xlu0 %170
    %v173 = vmul.f32 %v167, %v171
    %v174 = vxor.u32 %v158, 2147483648
    %v175 = vmul.f32 %v174, 1.442695
    %v176 = vpow.pop %v175
    %v177 = vadd.f32 %v176, 1.0
    %v178 = vrcp.pop %v177
    %v179 = vmul.f32 1.0, %v178
    %v180 = vtanh.pop %v173
    %v181 = vmul.f32 %v179, %v180
    %v182 = vpack.c.bf16 %v181, %v181
    %v183 = vld [vmem:[#allocation7] sm:$0xff]
    %v184 = vld [vmem:[#allocation7 + $0x8] sm:$0xff]
    %v185 = vld [vmem:[#allocation7 + $0x10] sm:$0xff]
    %v186 = vld [vmem:[#allocation7 + $0x18] sm:$0xff]
    %v187 = vld [vmem:[#allocation7 + $0x20] sm:$0xff]
    %v188 = vld [vmem:[#allocation7 + $0x28] sm:$0xff]
    %v189 = vld [vmem:[#allocation7 + $0x30] sm:$0xff]
    %v190 = vld [vmem:[#allocation7 + $0x38] sm:$0xff]
    %v191 = vld [vmem:[%s4] sm:$0x3]
    %v193 = vlaneseq
    %v194 = vshrl.u32 %v193, 7
    %v195 = vsub.s32 0, %v194
    %v196 = vrot.slane %v191, %v195
    %v197 = vlaneseq
    %v198 = vshrl.u32 %v197, 7
    %v199 = vsub.s32 1, %v198
    %v200 = vrot.slane %v191, %v199
    %v211 = vunpack.c.l.b16 %v183
    %v212 = vunpack.c.h.b16 %v183
    %v213 = vunpack.c.l.b16 %v184
    %v214 = vunpack.c.h.b16 %v184
    %v215 = vunpack.c.l.b16 %v185
    %v216 = vunpack.c.h.b16 %v185
    %v217 = vunpack.c.l.b16 %v186
    %v218 = vunpack.c.h.b16 %v186
    %v219 = vunpack.c.l.b16 %v187
    %v220 = vunpack.c.h.b16 %v187
    %v221 = vunpack.c.l.b16 %v188
    %v222 = vunpack.c.h.b16 %v188
    %v223 = vunpack.c.l.b16 %v189
    %v224 = vunpack.c.h.b16 %v189
    %v225 = vunpack.c.l.b16 %v190
    %v226 = vunpack.c.h.b16 %v190
    %v227 = vpack.c.b16 %v213, %v211
    %v228 = vpack.c.b16 %v214, %v212
    %v229 = vpack.c.b16 %v217, %v215
    %v230 = vpack.c.b16 %v218, %v216
    %v231 = vpack.c.b16 %v221, %v219
    %v232 = vpack.c.b16 %v222, %v220
    %v233 = vpack.c.b16 %v225, %v223
    %v234 = vpack.c.b16 %v226, %v224
    %vm243 = vcmask 523264
    %v245 = vsel %vm243, %v182, 0
    %247 = vmatprep.subr.bf16.mxu0 0
    %248 = vmatpush1.bf16.msra.mxu0 0
    %249 = vmatprep.subr.bf16.mxu0 0
    %250 = vmatpush1.bf16.msra.mxu0 0
    %251 = vmatprep.subr.bf16.mxu0 0
    %252 = vmatpush1.bf16.msra.mxu0 0
    %253 = vmatprep.subr.bf16.mxu0 0
    %254 = vmatpush1.bf16.msra.mxu0 0
    %255 = vmatprep.subr.bf16.mxu0 %v234
    %256 = vmatpush1.bf16.msra.mxu0 %v233
    %257 = vmatprep.subr.bf16.mxu0 %v232
    %258 = vmatpush1.bf16.msra.mxu0 %v231
    %259 = vmatprep.subr.bf16.mxu0 %v230
    %260 = vmatpush1.bf16.msra.mxu0 %v229
    %261 = vmatprep.subr.bf16.mxu0 %v228
    %262 = vmatpush1.bf16.msra.mxu0 %v227
    %263 = vmatprep.subr.bf16.mxu0 0
    %264 = vmatpush2.bf16.msra.mxu0 0
    %265 = vmatprep.subr.bf16.mxu0 0
    %266 = vmatpush2.bf16.msra.mxu0 0
    %267 = vmatprep.subr.bf16.mxu0 0
    %268 = vmatpush2.bf16.msra.mxu0 0
    %269 = vmatprep.subr.bf16.mxu0 0
    %270 = vmatpush2.bf16.msra.mxu0 0
    %271 = vmatprep.subr.bf16.mxu0 0
    %272 = vmatpush2.bf16.msra.mxu0 0
    %273 = vmatprep.subr.bf16.mxu0 0
    %274 = vmatpush2.bf16.msra.mxu0 0
    %275 = vmatprep.subr.bf16.mxu0 0
    %276 = vmatpush2.bf16.msra.mxu0 0
    %277 = vmatprep.subr.bf16.mxu0 0
    %278 = vmatpush2.bf16.msra.mxu0 0
    %279 = vmatprep.mubr.bf16.mxu0 0
    %280 = vmatmul.mubr.bf16.gmra.mxu0 %v245
    %v281 = vpop.f32.mrf.mxu0
    %v282 = vadd.f32 %v196, %v281
    %v283 = vpop.f32.mrf.mxu0
    %v284 = vadd.f32 %v200, %v283
    %v285 = vpop.f32.mrf.mxu0
    %v286 = vpop.f32.mrf.mxu0
    %287 = vdwg.mxu0
    %v288 = vxor.u32 %v282, 2147483648
    %v289 = vmul.f32 %v288, 1.442695
    %v290 = vpow.pop %v289
    %v291 = vadd.f32 %v290, 1.0
    %v292 = vrcp.pop %v291
    %v293 = vmul.f32 1.0, %v292
    %v294 = vtanh.pop %v282
    %296 = vrot.lane.b32.xlu0 %v294, 64
    %v297 = vpop.permute.xlu0 %296
    %v299 = vmul.f32 %v293, %v297
    %v300 = vxor.u32 %v284, 2147483648
    %v301 = vmul.f32 %v300, 1.442695
    %v302 = vpow.pop %v301
    %v303 = vadd.f32 %v302, 1.0
    %v304 = vrcp.pop %v303
    %v305 = vmul.f32 1.0, %v304
    %v306 = vtanh.pop %v299
    %v307 = vmul.f32 %v305, %v306
    %v308 = vpack.c.bf16 %v307, %v307
    %v309 = vld [vmem:[#allocation8] sm:$0xff]
    %v310 = vld [vmem:[#allocation8 + $0x8] sm:$0xff]
    %v311 = vld [vmem:[#allocation8 + $0x10] sm:$0xff]
    %v312 = vld [vmem:[#allocation8 + $0x18] sm:$0xff]
    %v313 = vld [vmem:[#allocation8 + $0x20] sm:$0xff]
    %v314 = vld [vmem:[#allocation8 + $0x28] sm:$0xff]
    %v315 = vld [vmem:[#allocation8 + $0x30] sm:$0xff]
    %v316 = vld [vmem:[#allocation8 + $0x38] sm:$0xff]
    %v317 = vld [vmem:[#allocation8 + $0x40] sm:$0xff]
    %v318 = vld [vmem:[#allocation8 + $0x48] sm:$0xff]
    %v319 = vld [vmem:[#allocation8 + $0x50] sm:$0xff]
    %v320 = vld [vmem:[#allocation8 + $0x58] sm:$0xff]
    %v321 = vld [vmem:[#allocation8 + $0x60] sm:$0xff]
    %v322 = vld [vmem:[#allocation8 + $0x68] sm:$0xff]
    %v323 = vld [vmem:[#allocation8 + $0x70] sm:$0xff]
    %v324 = vld [vmem:[#allocation8 + $0x78] sm:$0xff]
    %v325 = vld [vmem:[#allocation8 + $0x80] sm:$0xff]
    %v326 = vld [vmem:[#allocation8 + $0x88] sm:$0xff]
    %v327 = vld [vmem:[#allocation8 + $0x90] sm:$0xff]
    %v328 = vld [vmem:[#allocation8 + $0x98] sm:$0xff]
    %v329 = vld [vmem:[#allocation8 + $0xa0] sm:$0xff]
    %v330 = vld [vmem:[#allocation8 + $0xa8] sm:$0xff]
    %v331 = vld [vmem:[#allocation8 + $0xb0] sm:$0xff]
    %v332 = vld [vmem:[#allocation8 + $0xb8] sm:$0xff]
    %v333 = vld [vmem:[#allocation8 + $0xc0] sm:$0xff]
    %v334 = vld [vmem:[#allocation8 + $0xc8] sm:$0xff]
    %v335 = vld [vmem:[#allocation8 + $0xd0] sm:$0xff]
    %v336 = vld [vmem:[#allocation8 + $0xd8] sm:$0xff]
    %v337 = vld [vmem:[#allocation8 + $0xe0] sm:$0xff]
    %v338 = vld [vmem:[#allocation8 + $0xe8] sm:$0xff]
    %v339 = vld [vmem:[#allocation8 + $0xf0] sm:$0xff]
    %v340 = vld [vmem:[#allocation8 + $0xf8] sm:$0xff]
    %v341 = vld [vmem:[#allocation8 + $0x100] sm:$0xff]
    %v342 = vld [vmem:[#allocation8 + $0x108] sm:$0xff]
    %v343 = vld [vmem:[#allocation8 + $0x110] sm:$0xff]
    %v344 = vld [vmem:[#allocation8 + $0x118] sm:$0xff]
    %v345 = vld [vmem:[#allocation8 + $0x120] sm:$0xff]
    %v346 = vld [vmem:[#allocation8 + $0x128] sm:$0xff]
    %v347 = vld [vmem:[#allocation8 + $0x130] sm:$0xff]
    %v348 = vld [vmem:[#allocation8 + $0x138] sm:$0xff]
    %v349 = vld [vmem:[#allocation8 + $0x140] sm:$0xff]
    %v350 = vld [vmem:[#allocation8 + $0x148] sm:$0xff]
    %v351 = vld [vmem:[#allocation8 + $0x150] sm:$0xff]
    %v352 = vld [vmem:[#allocation8 + $0x158] sm:$0xff]
    %v353 = vld [vmem:[#allocation8 + $0x160] sm:$0xff]
    %v354 = vld [vmem:[#allocation8 + $0x168] sm:$0xff]
    %v355 = vld [vmem:[#allocation8 + $0x170] sm:$0xff]
    %v356 = vld [vmem:[#allocation8 + $0x178] sm:$0xff]
    %v357 = vld [vmem:[#allocation8 + $0x180] sm:$0xff]
    %v358 = vld [vmem:[#allocation8 + $0x188] sm:$0xff]
    %v359 = vld [vmem:[#allocation8 + $0x190] sm:$0xff]
    %v360 = vld [vmem:[#allocation8 + $0x198] sm:$0xff]
    %v361 = vld [vmem:[#allocation8 + $0x1a0] sm:$0xff]
    %v362 = vld [vmem:[#allocation8 + $0x1a8] sm:$0xff]
    %v363 = vld [vmem:[#allocation8 + $0x1b0] sm:$0xff]
    %v364 = vld [vmem:[#allocation8 + $0x1b8] sm:$0xff]
    %v365 = vld [vmem:[#allocation8 + $0x1c0] sm:$0xff]
    %v366 = vld [vmem:[#allocation8 + $0x1c8] sm:$0xff]
    %v367 = vld [vmem:[#allocation8 + $0x1d0] sm:$0xff]
    %v368 = vld [vmem:[#allocation8 + $0x1d8] sm:$0xff]
    %v369 = vld [vmem:[#allocation8 + $0x1e0] sm:$0xff]
    %v370 = vld [vmem:[#allocation8 + $0x1e8] sm:$0xff]
    %v371 = vld [vmem:[#allocation8 + $0x1f0] sm:$0xff]
    %v372 = vld [vmem:[#allocation8 + $0x1f8] sm:$0xff]
    %v373 = vld [vmem:[#allocation10] sm:$0xff]
    %v374 = vld [vmem:[#allocation10 + $0x8] sm:$0xff]
    %v377 = vlaneseq
    %v378 = vshrl.u32 %v377, 7
    %v379 = vsub.s32 0, %v378
    %v380 = vrot.slane %v373, %v379
    %v381 = vlaneseq
    %v382 = vshrl.u32 %v381, 7
    %v383 = vsub.s32 1, %v382
    %v384 = vrot.slane %v373, %v383
    %v385 = vlaneseq
    %v386 = vshrl.u32 %v385, 7
    %v387 = vsub.s32 2, %v386
    %v388 = vrot.slane %v373, %v387
    %v389 = vlaneseq
    %v390 = vshrl.u32 %v389, 7
    %v391 = vsub.s32 3, %v390
    %v392 = vrot.slane %v373, %v391
    %v393 = vlaneseq
    %v394 = vshrl.u32 %v393, 7
    %v395 = vsub.s32 4, %v394
    %v396 = vrot.slane %v373, %v395
    %v397 = vlaneseq
    %v398 = vshrl.u32 %v397, 7
    %v399 = vsub.s32 5, %v398
    %v400 = vrot.slane %v373, %v399
    %v401 = vlaneseq
    %v402 = vshrl.u32 %v401, 7
    %v403 = vsub.s32 6, %v402
    %v404 = vrot.slane %v373, %v403
    %v405 = vlaneseq
    %v406 = vshrl.u32 %v405, 7
    %v407 = vsub.s32 7, %v406
    %v408 = vrot.slane %v373, %v407
    %v409 = vlaneseq
    %v410 = vshrl.u32 %v409, 7
    %v411 = vsub.s32 0, %v410
    %v412 = vrot.slane %v374, %v411
    %v413 = vlaneseq
    %v414 = vshrl.u32 %v413, 7
    %v415 = vsub.s32 1, %v414
    %v416 = vrot.slane %v374, %v415
    %v417 = vlaneseq
    %v418 = vshrl.u32 %v417, 7
    %v419 = vsub.s32 2, %v418
    %v420 = vrot.slane %v374, %v419
    %v421 = vlaneseq
    %v422 = vshrl.u32 %v421, 7
    %v423 = vsub.s32 3, %v422
    %v424 = vrot.slane %v374, %v423
    %v425 = vlaneseq
    %v426 = vshrl.u32 %v425, 7
    %v427 = vsub.s32 4, %v426
    %v428 = vrot.slane %v374, %v427
    %v429 = vlaneseq
    %v430 = vshrl.u32 %v429, 7
    %v431 = vsub.s32 5, %v430
    %v432 = vrot.slane %v374, %v431
    %v433 = vlaneseq
    %v434 = vshrl.u32 %v433, 7
    %v435 = vsub.s32 6, %v434
    %v436 = vrot.slane %v374, %v435
    %v437 = vlaneseq
    %v438 = vshrl.u32 %v437, 7
    %v439 = vsub.s32 7, %v438
    %v440 = vrot.slane %v374, %v439
    %v521 = vunpack.c.l.b16 %v309
    %v522 = vunpack.c.h.b16 %v309
    %v523 = vunpack.c.l.b16 %v310
    %v524 = vunpack.c.h.b16 %v310
    %v525 = vunpack.c.l.b16 %v311
    %v526 = vunpack.c.h.b16 %v311
    %v527 = vunpack.c.l.b16 %v312
    %v528 = vunpack.c.h.b16 %v312
    %v529 = vunpack.c.l.b16 %v313
    %v530 = vunpack.c.h.b16 %v313
    %v531 = vunpack.c.l.b16 %v314
    %v532 = vunpack.c.h.b16 %v314
    %v533 = vunpack.c.l.b16 %v315
    %v534 = vunpack.c.h.b16 %v315
    %v535 = vunpack.c.l.b16 %v316
    %v536 = vunpack.c.h.b16 %v316
    %v537 = vunpack.c.l.b16 %v317
    %v538 = vunpack.c.h.b16 %v317
    %v539 = vunpack.c.l.b16 %v318
    %v540 = vunpack.c.h.b16 %v318
    %v541 = vunpack.c.l.b16 %v319
    %v542 = vunpack.c.h.b16 %v319
    %v543 = vunpack.c.l.b16 %v320
    %v544 = vunpack.c.h.b16 %v320
    %v545 = vunpack.c.l.b16 %v321
    %v546 = vunpack.c.h.b16 %v321
    %v547 = vunpack.c.l.b16 %v322
    %v548 = vunpack.c.h.b16 %v322
    %v549 = vunpack.c.l.b16 %v323
    %v550 = vunpack.c.h.b16 %v323
    %v551 = vunpack.c.l.b16 %v324
    %v552 = vunpack.c.h.b16 %v324
    %v553 = vunpack.c.l.b16 %v325
    %v554 = vunpack.c.h.b16 %v325
    %v555 = vunpack.c.l.b16 %v326
    %v556 = vunpack.c.h.b16 %v326
    %v557 = vunpack.c.l.b16 %v327
    %v558 = vunpack.c.h.b16 %v327
    %v559 = vunpack.c.l.b16 %v328
    %v560 = vunpack.c.h.b16 %v328
    %v561 = vunpack.c.l.b16 %v329
    %v562 = vunpack.c.h.b16 %v329
    %v563 = vunpack.c.l.b16 %v330
    %v564 = vunpack.c.h.b16 %v330
    %v565 = vunpack.c.l.b16 %v331
    %v566 = vunpack.c.h.b16 %v331
    %v567 = vunpack.c.l.b16 %v332
    %v568 = vunpack.c.h.b16 %v332
    %v569 = vunpack.c.l.b16 %v333
    %v570 = vunpack.c.h.b16 %v333
    %v571 = vunpack.c.l.b16 %v334
    %v572 = vunpack.c.h.b16 %v334
    %v573 = vunpack.c.l.b16 %v335
    %v574 = vunpack.c.h.b16 %v335
    %v575 = vunpack.c.l.b16 %v336
    %v576 = vunpack.c.h.b16 %v336
    %v577 = vunpack.c.l.b16 %v337
    %v578 = vunpack.c.h.b16 %v337
    %v579 = vunpack.c.l.b16 %v338
    %v580 = vunpack.c.h.b16 %v338
    %v581 = vunpack.c.l.b16 %v339
    %v582 = vunpack.c.h.b16 %v339
    %v583 = vunpack.c.l.b16 %v340
    %v584 = vunpack.c.h.b16 %v340
    %v585 = vunpack.c.l.b16 %v341
    %v586 = vunpack.c.h.b16 %v341
    %v587 = vunpack.c.l.b16 %v342
    %v588 = vunpack.c.h.b16 %v342
    %v589 = vunpack.c.l.b16 %v343
    %v590 = vunpack.c.h.b16 %v343
    %v591 = vunpack.c.l.b16 %v344
    %v592 = vunpack.c.h.b16 %v344
    %v593 = vunpack.c.l.b16 %v345
    %v594 = vunpack.c.h.b16 %v345
    %v595 = vunpack.c.l.b16 %v346
    %v596 = vunpack.c.h.b16 %v346
    %v597 = vunpack.c.l.b16 %v347
    %v598 = vunpack.c.h.b16 %v347
    %v599 = vunpack.c.l.b16 %v348
    %v600 = vunpack.c.h.b16 %v348
    %v601 = vunpack.c.l.b16 %v349
    %v602 = vunpack.c.h.b16 %v349
    %v603 = vunpack.c.l.b16 %v350
    %v604 = vunpack.c.h.b16 %v350
    %v605 = vunpack.c.l.b16 %v351
    %v606 = vunpack.c.h.b16 %v351
    %v607 = vunpack.c.l.b16 %v352
    %v608 = vunpack.c.h.b16 %v352
    %v609 = vunpack.c.l.b16 %v353
    %v610 = vunpack.c.h.b16 %v353
    %v611 = vunpack.c.l.b16 %v354
    %v612 = vunpack.c.h.b16 %v354
    %v613 = vunpack.c.l.b16 %v355
    %v614 = vunpack.c.h.b16 %v355
    %v615 = vunpack.c.l.b16 %v356
    %v616 = vunpack.c.h.b16 %v356
    %v617 = vunpack.c.l.b16 %v357
    %v618 = vunpack.c.h.b16 %v357
    %v619 = vunpack.c.l.b16 %v358
    %v620 = vunpack.c.h.b16 %v358
    %v621 = vunpack.c.l.b16 %v359
    %v622 = vunpack.c.h.b16 %v359
    %v623 = vunpack.c.l.b16 %v360
    %v624 = vunpack.c.h.b16 %v360
    %v625 = vunpack.c.l.b16 %v361
    %v626 = vunpack.c.h.b16 %v361
    %v627 = vunpack.c.l.b16 %v362
    %v628 = vunpack.c.h.b16 %v362
    %v629 = vunpack.c.l.b16 %v363
    %v630 = vunpack.c.h.b16 %v363
    %v631 = vunpack.c.l.b16 %v364
    %v632 = vunpack.c.h.b16 %v364
    %v633 = vunpack.c.l.b16 %v365
    %v634 = vunpack.c.h.b16 %v365
    %v635 = vunpack.c.l.b16 %v366
    %v636 = vunpack.c.h.b16 %v366
    %v637 = vunpack.c.l.b16 %v367
    %v638 = vunpack.c.h.b16 %v367
    %v639 = vunpack.c.l.b16 %v368
    %v640 = vunpack.c.h.b16 %v368
    %v641 = vunpack.c.l.b16 %v369
    %v642 = vunpack.c.h.b16 %v369
    %v643 = vunpack.c.l.b16 %v370
    %v644 = vunpack.c.h.b16 %v370
    %v645 = vunpack.c.l.b16 %v371
    %v646 = vunpack.c.h.b16 %v371
    %v647 = vunpack.c.l.b16 %v372
    %v648 = vunpack.c.h.b16 %v372
    %v649 = vpack.c.b16 %v537, %v521
    %v650 = vpack.c.b16 %v538, %v522
    %v651 = vpack.c.b16 %v539, %v523
    %v652 = vpack.c.b16 %v540, %v524
    %v653 = vpack.c.b16 %v541, %v525
    %v654 = vpack.c.b16 %v542, %v526
    %v655 = vpack.c.b16 %v543, %v527
    %v656 = vpack.c.b16 %v544, %v528
    %v657 = vpack.c.b16 %v545, %v529
    %v658 = vpack.c.b16 %v546, %v530
    %v659 = vpack.c.b16 %v547, %v531
    %v660 = vpack.c.b16 %v548, %v532
    %v661 = vpack.c.b16 %v549, %v533
    %v662 = vpack.c.b16 %v550, %v534
    %v663 = vpack.c.b16 %v551, %v535
    %v664 = vpack.c.b16 %v552, %v536
    %v665 = vpack.c.b16 %v569, %v553
    %v666 = vpack.c.b16 %v570, %v554
    %v667 = vpack.c.b16 %v571, %v555
    %v668 = vpack.c.b16 %v572, %v556
    %v669 = vpack.c.b16 %v573, %v557
    %v670 = vpack.c.b16 %v574, %v558
    %v671 = vpack.c.b16 %v575, %v559
    %v672 = vpack.c.b16 %v576, %v560
    %v673 = vpack.c.b16 %v577, %v561
    %v674 = vpack.c.b16 %v578, %v562
    %v675 = vpack.c.b16 %v579, %v563
    %v676 = vpack.c.b16 %v580, %v564
    %v677 = vpack.c.b16 %v581, %v565
    %v678 = vpack.c.b16 %v582, %v566
    %v679 = vpack.c.b16 %v583, %v567
    %v680 = vpack.c.b16 %v584, %v568
    %v681 = vpack.c.b16 %v601, %v585
    %v682 = vpack.c.b16 %v602, %v586
    %v683 = vpack.c.b16 %v603, %v587
    %v684 = vpack.c.b16 %v604, %v588
    %v685 = vpack.c.b16 %v605, %v589
    %v686 = vpack.c.b16 %v606, %v590
    %v687 = vpack.c.b16 %v607, %v591
    %v688 = vpack.c.b16 %v608, %v592
    %v689 = vpack.c.b16 %v609, %v593
    %v690 = vpack.c.b16 %v610, %v594
    %v691 = vpack.c.b16 %v611, %v595
    %v692 = vpack.c.b16 %v612, %v596
    %v693 = vpack.c.b16 %v613, %v597
    %v694 = vpack.c.b16 %v614, %v598
    %v695 = vpack.c.b16 %v615, %v599
    %v696 = vpack.c.b16 %v616, %v600
    %v697 = vpack.c.b16 %v633, %v617
    %v698 = vpack.c.b16 %v634, %v618
    %v699 = vpack.c.b16 %v635, %v619
    %v700 = vpack.c.b16 %v636, %v620
    %v701 = vpack.c.b16 %v637, %v621
    %v702 = vpack.c.b16 %v638, %v622
    %v703 = vpack.c.b16 %v639, %v623
    %v704 = vpack.c.b16 %v640, %v624
    %v705 = vpack.c.b16 %v641, %v625
    %v706 = vpack.c.b16 %v642, %v626
    %v707 = vpack.c.b16 %v643, %v627
    %v708 = vpack.c.b16 %v644, %v628
    %v709 = vpack.c.b16 %v645, %v629
    %v710 = vpack.c.b16 %v646, %v630
    %v711 = vpack.c.b16 %v647, %v631
    %v712 = vpack.c.b16 %v648, %v632
    %v778 = vsel %vm243, %v308, 0
    %780 = vmatprep.subr.bf16.mxu0 0
    %781 = vmatpush1.bf16.msra.mxu0 0
    %782 = vmatprep.subr.bf16.mxu0 0
    %783 = vmatpush1.bf16.msra.mxu0 0
    %784 = vmatprep.subr.bf16.mxu0 0
    %785 = vmatpush1.bf16.msra.mxu0 0
    %786 = vmatprep.subr.bf16.mxu0 0
    %787 = vmatpush1.bf16.msra.mxu0 0
    %788 = vmatprep.subr.bf16.mxu0 %v698
    %789 = vmatpush1.bf16.msra.mxu0 %v697
    %790 = vmatprep.subr.bf16.mxu0 %v682
    %791 = vmatpush1.bf16.msra.mxu0 %v681
    %792 = vmatprep.subr.bf16.mxu0 %v666
    %793 = vmatpush1.bf16.msra.mxu0 %v665
    %794 = vmatprep.subr.bf16.mxu0 %v650
    %795 = vmatpush1.bf16.msra.mxu0 %v649
    %796 = vmatprep.subr.bf16.mxu0 0
    %797 = vmatpush2.bf16.msra.mxu0 0
    %798 = vmatprep.subr.bf16.mxu0 0
    %799 = vmatpush2.bf16.msra.mxu0 0
    %800 = vmatprep.subr.bf16.mxu0 0
    %801 = vmatpush2.bf16.msra.mxu0 0
    %802 = vmatprep.subr.bf16.mxu0 0
    %803 = vmatpush2.bf16.msra.mxu0 0
    %804 = vmatprep.subr.bf16.mxu0 0
    %805 = vmatpush2.bf16.msra.mxu0 0
    %806 = vmatprep.subr.bf16.mxu0 0
    %807 = vmatpush2.bf16.msra.mxu0 0
    %808 = vmatprep.subr.bf16.mxu0 0
    %809 = vmatpush2.bf16.msra.mxu0 0
    %810 = vmatprep.subr.bf16.mxu0 0
    %811 = vmatpush2.bf16.msra.mxu0 0
    %812 = vmatprep.mubr.bf16.mxu0 0
    %813 = vmatmul.mubr.bf16.gmra.mxu0 %v778
    %v814 = vpop.f32.mrf.mxu0
    %v815 = vadd.f32 %v380, %v814
    %v816 = vpop.f32.mrf.mxu0
    %v817 = vadd.f32 %v384, %v816
    %v818 = vpop.f32.mrf.mxu0
    %v819 = vpop.f32.mrf.mxu0
    %820 = vdwg.mxu0
    %821 = vmatprep.subr.bf16.mxu0 0
    %822 = vmatpush1.bf16.msra.mxu0 0
    %823 = vmatprep.subr.bf16.mxu0 0
    %824 = vmatpush1.bf16.msra.mxu0 0
    %825 = vmatprep.subr.bf16.mxu0 0
    %826 = vmatpush1.bf16.msra.mxu0 0
    %827 = vmatprep.subr.bf16.mxu0 0
    %828 = vmatpush1.bf16.msra.mxu0 0
    %829 = vmatprep.subr.bf16.mxu0 %v700
    %830 = vmatpush1.bf16.msra.mxu0 %v699
    %831 = vmatprep.subr.bf16.mxu0 %v684
    %832 = vmatpush1.bf16.msra.mxu0 %v683
    %833 = vmatprep.subr.bf16.mxu0 %v668
    %834 = vmatpush1.bf16.msra.mxu0 %v667
    %835 = vmatprep.subr.bf16.mxu0 %v652
    %836 = vmatpush1.bf16.msra.mxu0 %v651
    %837 = vmatprep.subr.bf16.mxu0 0
    %838 = vmatpush2.bf16.msra.mxu0 0
    %839 = vmatprep.subr.bf16.mxu0 0
    %840 = vmatpush2.bf16.msra.mxu0 0
    %841 = vmatprep.subr.bf16.mxu0 0
    %842 = vmatpush2.bf16.msra.mxu0 0
    %843 = vmatprep.subr.bf16.mxu0 0
    %844 = vmatpush2.bf16.msra.mxu0 0
    %845 = vmatprep.subr.bf16.mxu0 0
    %846 = vmatpush2.bf16.msra.mxu0 0
    %847 = vmatprep.subr.bf16.mxu0 0
    %848 = vmatpush2.bf16.msra.mxu0 0
    %849 = vmatprep.subr.bf16.mxu0 0
    %850 = vmatpush2.bf16.msra.mxu0 0
    %851 = vmatprep.subr.bf16.mxu0 0
    %852 = vmatpush2.bf16.msra.mxu0 0
    %853 = vmatprep.mubr.bf16.mxu0 0
    %854 = vmatmul.mubr.bf16.gmra.mxu0 %v778
    %v855 = vpop.f32.mrf.mxu0
    %v856 = vadd.f32 %v388, %v855
    %v857 = vpop.f32.mrf.mxu0
    %v858 = vadd.f32 %v392, %v857
    %v859 = vpop.f32.mrf.mxu0
    %v860 = vpop.f32.mrf.mxu0
    %861 = vdwg.mxu0
    %862 = vmatprep.subr.bf16.mxu0 0
    %863 = vmatpush1.bf16.msra.mxu0 0
    %864 = vmatprep.subr.bf16.mxu0 0
    %865 = vmatpush1.bf16.msra.mxu0 0
    %866 = vmatprep.subr.bf16.mxu0 0
    %867 = vmatpush1.bf16.msra.mxu0 0
    %868 = vmatprep.subr.bf16.mxu0 0
    %869 = vmatpush1.bf16.msra.mxu0 0
    %870 = vmatprep.subr.bf16.mxu0 %v702
    %871 = vmatpush1.bf16.msra.mxu0 %v701
    %872 = vmatprep.subr.bf16.mxu0 %v686
    %873 = vmatpush1.bf16.msra.mxu0 %v685
    %874 = vmatprep.subr.bf16.mxu0 %v670
    %875 = vmatpush1.bf16.msra.mxu0 %v669
    %876 = vmatprep.subr.bf16.mxu0 %v654
    %877 = vmatpush1.bf16.msra.mxu0 %v653
    %878 = vmatprep.subr.bf16.mxu0 0
    %879 = vmatpush2.bf16.msra.mxu0 0
    %880 = vmatprep.subr.bf16.mxu0 0
    %881 = vmatpush2.bf16.msra.mxu0 0
    %882 = vmatprep.subr.bf16.mxu0 0
    %883 = vmatpush2.bf16.msra.mxu0 0
    %884 = vmatprep.subr.bf16.mxu0 0
    %885 = vmatpush2.bf16.msra.mxu0 0
    %886 = vmatprep.subr.bf16.mxu0 0
    %887 = vmatpush2.bf16.msra.mxu0 0
    %888 = vmatprep.subr.bf16.mxu0 0
    %889 = vmatpush2.bf16.msra.mxu0 0
    %890 = vmatprep.subr.bf16.mxu0 0
    %891 = vmatpush2.bf16.msra.mxu0 0
    %892 = vmatprep.subr.bf16.mxu0 0
    %893 = vmatpush2.bf16.msra.mxu0 0
    %894 = vmatprep.mubr.bf16.mxu0 0
    %895 = vmatmul.mubr.bf16.gmra.mxu0 %v778
    %v896 = vpop.f32.mrf.mxu0
    %v897 = vadd.f32 %v396, %v896
    %v898 = vpop.f32.mrf.mxu0
    %v899 = vadd.f32 %v400, %v898
    %v900 = vpop.f32.mrf.mxu0
    %v901 = vpop.f32.mrf.mxu0
    %902 = vdwg.mxu0
    %903 = vmatprep.subr.bf16.mxu0 0
    %904 = vmatpush1.bf16.msra.mxu0 0
    %905 = vmatprep.subr.bf16.mxu0 0
    %906 = vmatpush1.bf16.msra.mxu0 0
    %907 = vmatprep.subr.bf16.mxu0 0
    %908 = vmatpush1.bf16.msra.mxu0 0
    %909 = vmatprep.subr.bf16.mxu0 0
    %910 = vmatpush1.bf16.msra.mxu0 0
    %911 = vmatprep.subr.bf16.mxu0 %v704
    %912 = vmatpush1.bf16.msra.mxu0 %v703
    %913 = vmatprep.subr.bf16.mxu0 %v688
    %914 = vmatpush1.bf16.msra.mxu0 %v687
    %915 = vmatprep.subr.bf16.mxu0 %v672
    %916 = vmatpush1.bf16.msra.mxu0 %v671
    %917 = vmatprep.subr.bf16.mxu0 %v656
    %918 = vmatpush1.bf16.msra.mxu0 %v655
    %919 = vmatprep.subr.bf16.mxu0 0
    %920 = vmatpush2.bf16.msra.mxu0 0
    %921 = vmatprep.subr.bf16.mxu0 0
    %922 = vmatpush2.bf16.msra.mxu0 0
    %923 = vmatprep.subr.bf16.mxu0 0
    %924 = vmatpush2.bf16.msra.mxu0 0
    %925 = vmatprep.subr.bf16.mxu0 0
    %926 = vmatpush2.bf16.msra.mxu0 0
    %927 = vmatprep.subr.bf16.mxu0 0
    %928 = vmatpush2.bf16.msra.mxu0 0
    %929 = vmatprep.subr.bf16.mxu0 0
    %930 = vmatpush2.bf16.msra.mxu0 0
    %931 = vmatprep.subr.bf16.mxu0 0
    %932 = vmatpush2.bf16.msra.mxu0 0
    %933 = vmatprep.subr.bf16.mxu0 0
    %934 = vmatpush2.bf16.msra.mxu0 0
    %935 = vmatprep.mubr.bf16.mxu0 0
    %936 = vmatmul.mubr.bf16.gmra.mxu0 %v778
    %v937 = vpop.f32.mrf.mxu0
    %v938 = vadd.f32 %v404, %v937
    %v939 = vpop.f32.mrf.mxu0
    %v940 = vadd.f32 %v408, %v939
    %v941 = vpop.f32.mrf.mxu0
    %v942 = vpop.f32.mrf.mxu0
    %943 = vdwg.mxu0
    %944 = vmatprep.subr.bf16.mxu0 0
    %945 = vmatpush1.bf16.msra.mxu0 0
    %946 = vmatprep.subr.bf16.mxu0 0
    %947 = vmatpush1.bf16.msra.mxu0 0
    %948 = vmatprep.subr.bf16.mxu0 0
    %949 = vmatpush1.bf16.msra.mxu0 0
    %950 = vmatprep.subr.bf16.mxu0 0
    %951 = vmatpush1.bf16.msra.mxu0 0
    %952 = vmatprep.subr.bf16.mxu0 %v706
    %953 = vmatpush1.bf16.msra.mxu0 %v705
    %954 = vmatprep.subr.bf16.mxu0 %v690
    %955 = vmatpush1.bf16.msra.mxu0 %v689
    %956 = vmatprep.subr.bf16.mxu0 %v674
    %957 = vmatpush1.bf16.msra.mxu0 %v673
    %958 = vmatprep.subr.bf16.mxu0 %v658
    %959 = vmatpush1.bf16.msra.mxu0 %v657
    %960 = vmatprep.subr.bf16.mxu0 0
    %961 = vmatpush2.bf16.msra.mxu0 0
    %962 = vmatprep.subr.bf16.mxu0 0
    %963 = vmatpush2.bf16.msra.mxu0 0
    %964 = vmatprep.subr.bf16.mxu0 0
    %965 = vmatpush2.bf16.msra.mxu0 0
    %966 = vmatprep.subr.bf16.mxu0 0
    %967 = vmatpush2.bf16.msra.mxu0 0
    %968 = vmatprep.subr.bf16.mxu0 0
    %969 = vmatpush2.bf16.msra.mxu0 0
    %970 = vmatprep.subr.bf16.mxu0 0
    %971 = vmatpush2.bf16.msra.mxu0 0
    %972 = vmatprep.subr.bf16.mxu0 0
    %973 = vmatpush2.bf16.msra.mxu0 0
    %974 = vmatprep.subr.bf16.mxu0 0
    %975 = vmatpush2.bf16.msra.mxu0 0
    %976 = vmatprep.mubr.bf16.mxu0 0
    %977 = vmatmul.mubr.bf16.gmra.mxu0 %v778
    %v978 = vpop.f32.mrf.mxu0
    %v979 = vadd.f32 %v412, %v978
    %v980 = vpop.f32.mrf.mxu0
    %v981 = vadd.f32 %v416, %v980
    %v982 = vpop.f32.mrf.mxu0
    %v983 = vpop.f32.mrf.mxu0
    %984 = vdwg.mxu0
    %985 = vmatprep.subr.bf16.mxu0 0
    %986 = vmatpush1.bf16.msra.mxu0 0
    %987 = vmatprep.subr.bf16.mxu0 0
    %988 = vmatpush1.bf16.msra.mxu0 0
    %989 = vmatprep.subr.bf16.mxu0 0
    %990 = vmatpush1.bf16.msra.mxu0 0
    %991 = vmatprep.subr.bf16.mxu0 0
    %992 = vmatpush1.bf16.msra.mxu0 0
    %993 = vmatprep.subr.bf16.mxu0 %v708
    %994 = vmatpush1.bf16.msra.mxu0 %v707
    %995 = vmatprep.subr.bf16.mxu0 %v692
    %996 = vmatpush1.bf16.msra.mxu0 %v691
    %997 = vmatprep.subr.bf16.mxu0 %v676
    %998 = vmatpush1.bf16.msra.mxu0 %v675
    %999 = vmatprep.subr.bf16.mxu0 %v660
    %1000 = vmatpush1.bf16.msra.mxu0 %v659
    %1001 = vmatprep.subr.bf16.mxu0 0
    %1002 = vmatpush2.bf16.msra.mxu0 0
    %1003 = vmatprep.subr.bf16.mxu0 0
    %1004 = vmatpush2.bf16.msra.mxu0 0
    %1005 = vmatprep.subr.bf16.mxu0 0
    %1006 = vmatpush2.bf16.msra.mxu0 0
    %1007 = vmatprep.subr.bf16.mxu0 0
    %1008 = vmatpush2.bf16.msra.mxu0 0
    %1009 = vmatprep.subr.bf16.mxu0 0
    %1010 = vmatpush2.bf16.msra.mxu0 0
    %1011 = vmatprep.subr.bf16.mxu0 0
    %1012 = vmatpush2.bf16.msra.mxu0 0
    %1013 = vmatprep.subr.bf16.mxu0 0
    %1014 = vmatpush2.bf16.msra.mxu0 0
    %1015 = vmatprep.subr.bf16.mxu0 0
    %1016 = vmatpush2.bf16.msra.mxu0 0
    %1017 = vmatprep.mubr.bf16.mxu0 0
    %1018 = vmatmul.mubr.bf16.gmra.mxu0 %v778
    %v1019 = vpop.f32.mrf.mxu0
    %v1020 = vadd.f32 %v420, %v1019
    %v1021 = vpop.f32.mrf.mxu0
    %v1022 = vadd.f32 %v424, %v1021
    %v1023 = vpop.f32.mrf.mxu0
    %v1024 = vpop.f32.mrf.mxu0
    %1025 = vdwg.mxu0
    %1026 = vmatprep.subr.bf16.mxu0 0
    %1027 = vmatpush1.bf16.msra.mxu0 0
    %1028 = vmatprep.subr.bf16.mxu0 0
    %1029 = vmatpush1.bf16.msra.mxu0 0
    %1030 = vmatprep.subr.bf16.mxu0 0
    %1031 = vmatpush1.bf16.msra.mxu0 0
    %1032 = vmatprep.subr.bf16.mxu0 0
    %1033 = vmatpush1.bf16.msra.mxu0 0
    %1034 = vmatprep.subr.bf16.mxu0 %v710
    %1035 = vmatpush1.bf16.msra.mxu0 %v709
    %1036 = vmatprep.subr.bf16.mxu0 %v694
    %1037 = vmatpush1.bf16.msra.mxu0 %v693
    %1038 = vmatprep.subr.bf16.mxu0 %v678
    %1039 = vmatpush1.bf16.msra.mxu0 %v677
    %1040 = vmatprep.subr.bf16.mxu0 %v662
    %1041 = vmatpush1.bf16.msra.mxu0 %v661
    %1042 = vmatprep.subr.bf16.mxu0 0
    %1043 = vmatpush2.bf16.msra.mxu0 0
    %1044 = vmatprep.subr.bf16.mxu0 0
    %1045 = vmatpush2.bf16.msra.mxu0 0
    %1046 = vmatprep.subr.bf16.mxu0 0
    %1047 = vmatpush2.bf16.msra.mxu0 0
    %1048 = vmatprep.subr.bf16.mxu0 0
    %1049 = vmatpush2.bf16.msra.mxu0 0
    %1050 = vmatprep.subr.bf16.mxu0 0
    %1051 = vmatpush2.bf16.msra.mxu0 0
    %1052 = vmatprep.subr.bf16.mxu0 0
    %1053 = vmatpush2.bf16.msra.mxu0 0
    %1054 = vmatprep.subr.bf16.mxu0 0
    %1055 = vmatpush2.bf16.msra.mxu0 0
    %1056 = vmatprep.subr.bf16.mxu0 0
    %1057 = vmatpush2.bf16.msra.mxu0 0
    %1058 = vmatprep.mubr.bf16.mxu0 0
    %1059 = vmatmul.mubr.bf16.gmra.mxu0 %v778
    %v1060 = vpop.f32.mrf.mxu0
    %v1061 = vadd.f32 %v428, %v1060
    %v1062 = vpop.f32.mrf.mxu0
    %v1063 = vadd.f32 %v432, %v1062
    %v1064 = vpop.f32.mrf.mxu0
    %v1065 = vpop.f32.mrf.mxu0
    %1066 = vdwg.mxu0
    %1067 = vmatprep.subr.bf16.mxu0 0
    %1068 = vmatpush1.bf16.msra.mxu0 0
    %1069 = vmatprep.subr.bf16.mxu0 0
    %1070 = vmatpush1.bf16.msra.mxu0 0
    %1071 = vmatprep.subr.bf16.mxu0 0
    %1072 = vmatpush1.bf16.msra.mxu0 0
    %1073 = vmatprep.subr.bf16.mxu0 0
    %1074 = vmatpush1.bf16.msra.mxu0 0
    %1075 = vmatprep.subr.bf16.mxu0 %v712
    %1076 = vmatpush1.bf16.msra.mxu0 %v711
    %1077 = vmatprep.subr.bf16.mxu0 %v696
    %1078 = vmatpush1.bf16.msra.mxu0 %v695
    %1079 = vmatprep.subr.bf16.mxu0 %v680
    %1080 = vmatpush1.bf16.msra.mxu0 %v679
    %1081 = vmatprep.subr.bf16.mxu0 %v664
    %1082 = vmatpush1.bf16.msra.mxu0 %v663
    %1083 = vmatprep.subr.bf16.mxu0 0
    %1084 = vmatpush2.bf16.msra.mxu0 0
    %1085 = vmatprep.subr.bf16.mxu0 0
    %1086 = vmatpush2.bf16.msra.mxu0 0
    %1087 = vmatprep.subr.bf16.mxu0 0
    %1088 = vmatpush2.bf16.msra.mxu0 0
    %1089 = vmatprep.subr.bf16.mxu0 0
    %1090 = vmatpush2.bf16.msra.mxu0 0
    %1091 = vmatprep.subr.bf16.mxu0 0
    %1092 = vmatpush2.bf16.msra.mxu0 0
    %1093 = vmatprep.subr.bf16.mxu0 0
    %1094 = vmatpush2.bf16.msra.mxu0 0
    %1095 = vmatprep.subr.bf16.mxu0 0
    %1096 = vmatpush2.bf16.msra.mxu0 0
    %1097 = vmatprep.subr.bf16.mxu0 0
    %1098 = vmatpush2.bf16.msra.mxu0 0
    %1099 = vmatprep.mubr.bf16.mxu0 0
    %1100 = vmatmul.mubr.bf16.gmra.mxu0 %v778
    %v1101 = vpop.f32.mrf.mxu0
    %v1102 = vadd.f32 %v436, %v1101
    %v1103 = vpop.f32.mrf.mxu0
    %v1104 = vadd.f32 %v440, %v1103
    %v1105 = vpop.f32.mrf.mxu0
    %v1106 = vpop.f32.mrf.mxu0
    %1107 = vdwg.mxu0
    %v1124 = vcombine.low %v815, %v817
    %v1125 = vcombine.low %v856, %v858
    %v1127 = vunpack.c.l.s4 1983009808
    %v1128 = vunpack.c.0.s8 %v1127
    %v1129 = vlaneseq
    %v1130 = vshrl.u32 %v1129, 7
    %v1131 = vsub.s32 %v1128, %v1130
    %v1132 = vrot.slane %v1124, %v1131
    %v1134 = vunpack.c.l.s4 1983009808
    %v1135 = vunpack.c.0.s8 %v1134
    %v1136 = vlaneseq
    %v1137 = vshrl.u32 %v1136, 7
    %v1138 = vsub.s32 %v1135, %v1137
    %v1139 = vrot.slane %v1125, %v1138
    %v1140 = vcombine.low %v1132, %v1139
    %v1141 = vcombine.low %v897, %v899
    %v1142 = vcombine.low %v938, %v940
    %v1144 = vunpack.c.l.s4 1983009808
    %v1145 = vunpack.c.0.s8 %v1144
    %v1146 = vlaneseq
    %v1147 = vshrl.u32 %v1146, 7
    %v1148 = vsub.s32 %v1145, %v1147
    %v1149 = vrot.slane %v1141, %v1148
    %v1151 = vunpack.c.l.s4 1983009808
    %v1152 = vunpack.c.0.s8 %v1151
    %v1153 = vlaneseq
    %v1154 = vshrl.u32 %v1153, 7
    %v1155 = vsub.s32 %v1152, %v1154
    %v1156 = vrot.slane %v1142, %v1155
    %v1157 = vcombine.low %v1149, %v1156
    %v1158 = vcombine.low %v979, %v981
    %v1159 = vcombine.low %v1020, %v1022
    %v1161 = vunpack.c.l.s4 1983009808
    %v1162 = vunpack.c.0.s8 %v1161
    %v1163 = vlaneseq
    %v1164 = vshrl.u32 %v1163, 7
    %v1165 = vsub.s32 %v1162, %v1164
    %v1166 = vrot.slane %v1158, %v1165
    %v1168 = vunpack.c.l.s4 1983009808
    %v1169 = vunpack.c.0.s8 %v1168
    %v1170 = vlaneseq
    %v1171 = vshrl.u32 %v1170, 7
    %v1172 = vsub.s32 %v1169, %v1171
    %v1173 = vrot.slane %v1159, %v1172
    %v1174 = vcombine.low %v1166, %v1173
    %v1175 = vcombine.low %v1061, %v1063
    %v1176 = vcombine.low %v1102, %v1104
    %v1178 = vunpack.c.l.s4 1983009808
    %v1179 = vunpack.c.0.s8 %v1178
    %v1180 = vlaneseq
    %v1181 = vshrl.u32 %v1180, 7
    %v1182 = vsub.s32 %v1179, %v1181
    %v1183 = vrot.slane %v1175, %v1182
    %v1185 = vunpack.c.l.s4 1983009808
    %v1186 = vunpack.c.0.s8 %v1185
    %v1187 = vlaneseq
    %v1188 = vshrl.u32 %v1187, 7
    %v1189 = vsub.s32 %v1186, %v1188
    %v1190 = vrot.slane %v1176, %v1189
    %v1191 = vcombine.low %v1183, %v1190
    %1196 = vst [vmem:[#allocation11] sm:$0xff] %v1140
    %1197 = vst [vmem:[#allocation11 + $0x8] sm:$0xff] %v1157
    %1198 = vst [vmem:[#allocation11 + $0x10] sm:$0xff] %v1174
    %1199 = vst [vmem:[#allocation11 + $0x18] sm:$0xff] %v1191
    // Predicated region
    $region50: #{tpu_custom_call.1} parent=1 // pred_check
      _
    $region51: #{tpu_custom_call.1} parent=1 // pred_check_branch
      %1201 = sbr.rel (0) target = $region53
    $region52: #{tpu_custom_call.1} parent=1 // pred_region
      %s1203 = ssub.s32 512, 512
      %1204 = vsyncadd [#allocation4], %s1203
      %s1206 = sshll.u32 [#allocation11], 4
      %s1207 = int_to_ptr.vmem [resolvable:$true] %s1206
      %1209 = dma.vmem_to_hbm [thread:$0]  %s1207, 512, %s7, [#allocation4]
    $region53: #{tpu_custom_call.1} parent=1 // pred_fallthru
      _
    // Predicated region
    $region54: #{tpu_custom_call.1} parent=1 // pred_check
      _
    $region55: #{tpu_custom_call.1} parent=1 // pred_check_branch
      %1211 = sbr.rel (0) target = $region57
    $region56: #{tpu_custom_call.1} parent=1 // pred_region
      %1212 = dma.done [#allocation4], 512
    $region57: #{tpu_custom_call.1} parent=1 // pred_fallthru
      _
    %1213 = vsyncpa [#allocation3], 1
    %1214 = vsyncpa [#allocation6], 1
    %1215 = vsyncpa [#allocation9], 1
    %1216 = vsyncpa [#allocation4], 1

</llo_original>
